<compile_context>
chip_gen: v6e
topology: v6e:2x2x1
jax: 0.10.0
libtpu: 0.0.40
codegen_flags: <defaults>
</compile_context>

<pallas_src>
import math
from functools import partial

import jax
import jax.numpy as jnp
from jax import lax
from jax.experimental import pallas as pl
from jax.experimental.pallas import tpu as pltpu

BN_EPS = 1e-5


def _make_kernel(n, c, l, k, tc, mxu_dtype):
    """Fused conv + BN + ReLU + residual kernel for static (N, C, L, K, tc)."""
    nl = n * l
    pad = k // 2
    prec = (lax.Precision.HIGHEST
            if jnp.dtype(mxu_dtype) == jnp.dtype(jnp.float32) else None)

    def kernel(x_ref, w_ref, m_ref, b_ref, g_ref, beta_ref, o_ref):
        # x: (C_in, N*L) -- channels on sublanes, batch*length on lanes.
        x = x_ref[...]

        # Conv as K accumulated MXU matmuls; one shifted tap live at a time.
        acc = jnp.zeros((tc, nl), jnp.float32)
        for kk in range(k):
            d = kk - pad                      # source offset of this tap
            shift = (-d) % nl
            xs = pltpu.roll(x, shift=shift, axis=1) if shift else x
            if d != 0:
                # Static edge mask (zero the 'same'-padding taps and kill the
                # cross-batch wraparound of the flattened roll).  f32 VPU math
                # (v5e has no bf16 VALU); cast to the MXU dtype afterwards.
                xs = xs * m_ref[kk]           # (1, N*L) broadcast over sublanes
            acc = acc + jnp.dot(w_ref[kk],                      # (tc, C_in)
                                xs.astype(mxu_dtype),           # (C_in, N*L)
                                preferred_element_type=jnp.float32,
                                precision=prec)

        # BatchNorm1d (training-mode batch stats, biased variance), folded into a
        # single per-channel scale/shift.  Stats over the lane axis (== (N, L)).
        # One reduction pass: mean + sum-of-squares.  Var(acc + b) == Var(acc).
        mean_acc = jnp.mean(acc, axis=1, keepdims=True)                    # (tc,1)
        var = jnp.maximum(
            jnp.mean(acc * acc, axis=1, keepdims=True) - mean_acc * mean_acc, 0.0)
        mean_y = mean_acc + b_ref[...]        # conv bias only shifts the mean
        scale = g_ref[...] * lax.rsqrt(var + BN_EPS)                       # (tc,1)
        shift_v = beta_ref[...] + (b_ref[...] - mean_y) * scale            # (tc,1)

        # One elementwise pass: FMA + ReLU + residual.  Residual re-reads x_ref
        # (same C_out slice as this tile) instead of keeping an f32 copy live.
        act = jnp.maximum(acc * scale + shift_v, 0.0)
        row = pl.multiple_of(pl.program_id(0) * tc, tc)
        xres = x_ref[pl.ds(row, tc), :].astype(jnp.float32)
        o_ref[...] = (xres + act).astype(o_ref.dtype)

    return kernel


@partial(jax.jit, static_argnames=("mxu_dtype",))
def conv1d_res_block(x, w, b, gamma, beta, *, mxu_dtype=jnp.bfloat16):
    """x: (N, C, L); w: (C, C, K) [OIW]; b/gamma/beta: (C,).  Returns (N, C, L)."""
    n, c, l = x.shape
    k = w.shape[-1]
    assert k % 2 == 1, "residual add requires odd kernel_size ('same' padding)"
    nl = n * l
    pad = k // 2

    # Output-channel tile (BN stats are per-channel -> tiles are independent).
    if c <= 256:
        tc = c
    elif c % 256 == 0:
        tc = 256                 # MXU-shaped tiles on v6e/v7x
    elif c % 128 == 0:
        tc = 128                 # v5e MXU shape
    else:
        tc = c

    # Wrapper-side layout plumbing (tiny, one-time):
    #   x -> lane-dense (C, N*L); w -> per-tap (K, C_out, C_in) in the MXU dtype;
    #   params -> (C, 1) for free sublane broadcast.
    x2 = jnp.transpose(x, (1, 0, 2)).reshape(c, nl)
    w3 = jnp.transpose(w, (2, 0, 1)).astype(mxu_dtype)      # w3[kk, o, i] = w[o, i, kk]
    b2 = b.reshape(c, 1).astype(jnp.float32)
    g2 = gamma.reshape(c, 1).astype(jnp.float32)
    bt2 = beta.reshape(c, 1).astype(jnp.float32)

    # Static per-tap edge masks over the flattened N*L lane axis (no in-kernel
    # iota/modulo).  Tap kk (offset d = kk - pad) is valid at positions
    # j in [max(0,-d), min(L, L-d)) within each length-L segment.
    pos = jnp.arange(nl, dtype=jnp.int32) % l
    mask_rows = []
    for kk in range(k):
        d = kk - pad
        lo, hi = max(0, -d), min(l, l - d)
        mask_rows.append(((pos >= lo) & (pos < hi)).astype(jnp.float32))
    masks = jnp.stack(mask_rows).reshape(k, 1, nl)

    grid = (c // tc,)
    out2 = pl.pallas_call(
        _make_kernel(n, c, l, k, tc, mxu_dtype),
        out_shape=jax.ShapeDtypeStruct((c, nl), x.dtype),
        grid=grid,
        in_specs=[
            pl.BlockSpec((c, nl), lambda i: (0, 0)),        # x: shipped once, reused by every tile
            pl.BlockSpec((k, tc, c), lambda i: (0, i, 0)),  # per-tap weights for this C_out tile
            pl.BlockSpec((k, 1, nl), lambda i: (0, 0, 0)),  # static edge masks
            pl.BlockSpec((tc, 1), lambda i: (i, 0)),        # conv bias
            pl.BlockSpec((tc, 1), lambda i: (i, 0)),        # gamma
            pl.BlockSpec((tc, 1), lambda i: (i, 0)),        # beta
        ],
        out_specs=pl.BlockSpec((tc, nl), lambda i: (i, 0)),
        compiler_params=pltpu.CompilerParams(
            dimension_semantics=("parallel",)),             # C_out tiles -> v7x megacore
    )(x2, w3, masks, b2, g2, bt2)

    return jnp.transpose(out2.reshape(c, n, l), (1, 0, 2))


def ref_forward(x, w, b, gamma, beta):
    """Pure-JAX reference of Conv1dResBlock.forward (training-mode BN)."""
    k = w.shape[-1]
    pad = k // 2
    y = lax.conv_general_dilated(
        x, w, window_strides=(1,), padding=[(pad, pad)],
        dimension_numbers=("NCH", "OIH", "NCH"),
        precision=lax.Precision.HIGHEST)
    y = y + b[None, :, None]
    mean = y.mean(axis=(0, 2), keepdims=True)
    var = ((y - mean) ** 2).mean(axis=(0, 2), keepdims=True)
    y = (y - mean) / jnp.sqrt(var + BN_EPS)
    y = y * gamma[None, :, None] + beta[None, :, None]
    return x + jnp.maximum(y, 0.0)


if __name__ == "__main__":
    N, C, L, K = 2, 8, 16, 3   # in_channels=8, kernel_size=3, padding=1

    key = jax.random.PRNGKey(0)
    kx, kw, kb = jax.random.split(key, 3)

    x = jax.random.normal(kx, (N, C, L), jnp.float32)

    # Deterministic PyTorch-style init: Conv1d weight/bias ~ U(-1/sqrt(fan_in), +),
    # BatchNorm gamma=1, beta=0.
    bound = 1.0 / math.sqrt(C * K)
    w = jax.random.uniform(kw, (C, C, K), jnp.float32, -bound, bound)
    b = jax.random.uniform(kb, (C,), jnp.float32, -bound, bound)
    gamma = jnp.ones((C,), jnp.float32)
    beta = jnp.zeros((C,), jnp.float32)

    ref = ref_forward(x, w, b, gamma, beta)

    # Default (performance) path: bf16 MXU operands, f32 accumulate/BN/residual.
    out_bf16 = jax.block_until_ready(conv1d_res_block(x, w, b, gamma, beta))
    assert out_bf16.shape == (N, C, L) and out_bf16.dtype == jnp.float32
    err_bf16 = float(jnp.abs(out_bf16 - ref).max())
    assert jnp.allclose(out_bf16, ref, atol=5e-2, rtol=5e-2), err_bf16

    # f32 path (precision=HIGHEST matmul) for a tight numeric check.
    out_f32 = jax.block_until_ready(
        conv1d_res_block(x, w, b, gamma, beta, mxu_dtype=jnp.float32))
    err_f32 = float(jnp.abs(out_f32 - ref).max())
    assert jnp.allclose(out_f32, ref, atol=1e-4, rtol=1e-4), err_f32

    print("KERNEL_OK")
</pallas_src>

<mosaic_0001>
module attributes {stable_mosaic.version = 11 : i64} {
  func.func @kernel(%arg0: i32, %arg1: memref<8x32xf32, #tpu.memory_space<vmem>>, %arg2: memref<3x8x8xbf16, #tpu.memory_space<vmem>>, %arg3: memref<3x1x32xf32, #tpu.memory_space<vmem>>, %arg4: memref<8x1xf32, #tpu.memory_space<vmem>>, %arg5: memref<8x1xf32, #tpu.memory_space<vmem>>, %arg6: memref<8x1xf32, #tpu.memory_space<vmem>>, %arg7: memref<8x32xf32, #tpu.memory_space<vmem>>) attributes {dimension_semantics = [#tpu.dimension_semantics<parallel>], iteration_bounds = array<i64: 1>, scalar_prefetch = 0 : i64, scratch_operands = 0 : i64, tpu.core_type = #tpu.core_type<tc>, window_params = [{pipeline_mode = #tpu.pipeline_mode<synchronous>, transform_indices = @transform_0, window_bounds = array<i64: 8, 32>}, {transform_indices = @transform_1, window_bounds = array<i64: 3, 8, 8>}, {pipeline_mode = #tpu.pipeline_mode<synchronous>, transform_indices = @transform_2, window_bounds = array<i64: 3, 1, 32>}, {transform_indices = @transform_3, window_bounds = array<i64: 8, 1>}, {transform_indices = @transform_4, window_bounds = array<i64: 8, 1>}, {transform_indices = @transform_5, window_bounds = array<i64: 8, 1>}, {transform_indices = @transform_6, window_bounds = array<i64: 8, 32>}]} {
    %c0 = arith.constant 0 : index
    %c0_0 = arith.constant 0 : index
    %0 = vector.load %arg1[%c0, %c0_0] : memref<8x32xf32, #tpu.memory_space<vmem>>, vector<8x32xf32>
    %cst = arith.constant 0.000000e+00 : f32
    %1 = vector.broadcast %cst : f32 to vector<8x32xf32>
    %c1_i32 = arith.constant 1 : i32
    %2 = tpu.dynamic_rotate %0 by %c1_i32 dim 1 : vector<8x32xf32>, i32 -> vector<8x32xf32>
    %c0_1 = arith.constant 0 : index
    %c0_2 = arith.constant 0 : index
    %c0_3 = arith.constant 0 : index
    %3 = vector.load %arg3[%c0_1, %c0_2, %c0_3] : memref<3x1x32xf32, #tpu.memory_space<vmem>>, vector<1x1x32xf32>
    %4 = vector.shape_cast %3 : vector<1x1x32xf32> to vector<1x32xf32>
    %5 = vector.broadcast %4 : vector<1x32xf32> to vector<8x32xf32>
    %6 = arith.mulf %2, %5 : vector<8x32xf32>
    %c0_4 = arith.constant 0 : index
    %c0_5 = arith.constant 0 : index
    %c0_6 = arith.constant 0 : index
    %7 = vector.load %arg2[%c0_4, %c0_5, %c0_6] : memref<3x8x8xbf16, #tpu.memory_space<vmem>>, vector<1x8x8xbf16>
    %8 = vector.shape_cast %7 : vector<1x8x8xbf16> to vector<8x8xbf16>
    %9 = arith.truncf %6 : vector<8x32xf32> to vector<8x32xbf16>
    %cst_7 = arith.constant dense<0.000000e+00> : vector<8x32xf32>
    %10 = tpu.matmul %8, %9, %cst_7 {dimension_numbers = #tpu.dot_dimension_numbers<[1], [0], [0], [1], [0, 0, 1, 1], [], []>} : vector<8x8xbf16>, vector<8x32xbf16>, vector<8x32xf32> -> vector<8x32xf32>
    %11 = arith.addf %1, %10 : vector<8x32xf32>
    %c1 = arith.constant 1 : index
    %c0_8 = arith.constant 0 : index
    %c0_9 = arith.constant 0 : index
    %12 = vector.load %arg2[%c1, %c0_8, %c0_9] : memref<3x8x8xbf16, #tpu.memory_space<vmem>>, vector<1x8x8xbf16>
    %13 = vector.shape_cast %12 : vector<1x8x8xbf16> to vector<8x8xbf16>
    %14 = arith.truncf %0 : vector<8x32xf32> to vector<8x32xbf16>
    %cst_10 = arith.constant dense<0.000000e+00> : vector<8x32xf32>
    %15 = tpu.matmul %13, %14, %cst_10 {dimension_numbers = #tpu.dot_dimension_numbers<[1], [0], [0], [1], [0, 0, 1, 1], [], []>} : vector<8x8xbf16>, vector<8x32xbf16>, vector<8x32xf32> -> vector<8x32xf32>
    %16 = arith.addf %11, %15 : vector<8x32xf32>
    %c31_i32 = arith.constant 31 : i32
    %17 = tpu.dynamic_rotate %0 by %c31_i32 dim 1 : vector<8x32xf32>, i32 -> vector<8x32xf32>
    %c2 = arith.constant 2 : index
    %c0_11 = arith.constant 0 : index
    %c0_12 = arith.constant 0 : index
    %18 = vector.load %arg3[%c2, %c0_11, %c0_12] : memref<3x1x32xf32, #tpu.memory_space<vmem>>, vector<1x1x32xf32>
    %19 = vector.shape_cast %18 : vector<1x1x32xf32> to vector<1x32xf32>
    %20 = vector.broadcast %19 : vector<1x32xf32> to vector<8x32xf32>
    %21 = arith.mulf %17, %20 : vector<8x32xf32>
    %c2_13 = arith.constant 2 : index
    %c0_14 = arith.constant 0 : index
    %c0_15 = arith.constant 0 : index
    %22 = vector.load %arg2[%c2_13, %c0_14, %c0_15] : memref<3x8x8xbf16, #tpu.memory_space<vmem>>, vector<1x8x8xbf16>
    %23 = vector.shape_cast %22 : vector<1x8x8xbf16> to vector<8x8xbf16>
    %24 = arith.truncf %21 : vector<8x32xf32> to vector<8x32xbf16>
    %cst_16 = arith.constant dense<0.000000e+00> : vector<8x32xf32>
    %25 = tpu.matmul %23, %24, %cst_16 {dimension_numbers = #tpu.dot_dimension_numbers<[1], [0], [0], [1], [0, 0, 1, 1], [], []>} : vector<8x8xbf16>, vector<8x32xbf16>, vector<8x32xf32> -> vector<8x32xf32>
    %26 = arith.addf %16, %25 : vector<8x32xf32>
    %cst_17 = arith.constant dense<0.000000e+00> : vector<8xf32>
    %27 = vector.multi_reduction <add>, %26, %cst_17 [1] : vector<8x32xf32> to vector<8xf32>
    %28 = vector.shape_cast %27 : vector<8xf32> to vector<8x1xf32>
    %cst_18 = arith.constant 3.200000e+01 : f32
    %29 = vector.broadcast %cst_18 : f32 to vector<8x1xf32>
    %30 = arith.divf %28, %29 : vector<8x1xf32>
    %31 = arith.mulf %26, %26 : vector<8x32xf32>
    %cst_19 = arith.constant dense<0.000000e+00> : vector<8xf32>
    %32 = vector.multi_reduction <add>, %31, %cst_19 [1] : vector<8x32xf32> to vector<8xf32>
    %33 = vector.shape_cast %32 : vector<8xf32> to vector<8x1xf32>
    %cst_20 = arith.constant 3.200000e+01 : f32
    %34 = vector.broadcast %cst_20 : f32 to vector<8x1xf32>
    %35 = arith.divf %33, %34 : vector<8x1xf32>
    %36 = arith.mulf %30, %30 : vector<8x1xf32>
    %37 = arith.subf %35, %36 : vector<8x1xf32>
    %cst_21 = arith.constant 0.000000e+00 : f32
    %38 = vector.broadcast %cst_21 : f32 to vector<8x1xf32>
    %39 = arith.maximumf %37, %38 : vector<8x1xf32>
    %c0_22 = arith.constant 0 : index
    %c0_23 = arith.constant 0 : index
    %40 = vector.load %arg4[%c0_22, %c0_23] : memref<8x1xf32, #tpu.memory_space<vmem>>, vector<8x1xf32>
    %41 = arith.addf %30, %40 : vector<8x1xf32>
    %c0_24 = arith.constant 0 : index
    %c0_25 = arith.constant 0 : index
    %42 = vector.load %arg5[%c0_24, %c0_25] : memref<8x1xf32, #tpu.memory_space<vmem>>, vector<8x1xf32>
    %cst_26 = arith.constant 9.99999974E-6 : f32
    %43 = vector.broadcast %cst_26 : f32 to vector<8x1xf32>
    %44 = arith.addf %39, %43 : vector<8x1xf32>
    %45 = math.rsqrt %44 : vector<8x1xf32>
    %46 = arith.mulf %42, %45 : vector<8x1xf32>
    %c0_27 = arith.constant 0 : index
    %c0_28 = arith.constant 0 : index
    %47 = vector.load %arg6[%c0_27, %c0_28] : memref<8x1xf32, #tpu.memory_space<vmem>>, vector<8x1xf32>
    %c0_29 = arith.constant 0 : index
    %c0_30 = arith.constant 0 : index
    %48 = vector.load %arg4[%c0_29, %c0_30] : memref<8x1xf32, #tpu.memory_space<vmem>>, vector<8x1xf32>
    %49 = arith.subf %48, %41 : vector<8x1xf32>
    %50 = arith.mulf %49, %46 : vector<8x1xf32>
    %51 = arith.addf %47, %50 : vector<8x1xf32>
    %52 = vector.broadcast %46 : vector<8x1xf32> to vector<8x32xf32>
    %53 = arith.mulf %26, %52 : vector<8x32xf32>
    %54 = vector.broadcast %51 : vector<8x1xf32> to vector<8x32xf32>
    %55 = arith.addf %53, %54 : vector<8x32xf32>
    %cst_31 = arith.constant 0.000000e+00 : f32
    %56 = vector.broadcast %cst_31 : f32 to vector<8x32xf32>
    %57 = arith.maximumf %55, %56 : vector<8x32xf32>
    %c8_i32 = arith.constant 8 : i32
    %58 = arith.muli %arg0, %c8_i32 : i32
    %59 = tpu.assume_multiple %58, 8 : i32
    %60 = arith.index_cast %59 : i32 to index
    %c0_32 = arith.constant 0 : index
    %61 = vector.load %arg1[%60, %c0_32] : memref<8x32xf32, #tpu.memory_space<vmem>>, vector<8x32xf32>
    %62 = arith.addf %61, %57 : vector<8x32xf32>
    %c0_33 = arith.constant 0 : index
    %c0_34 = arith.constant 0 : index
    %63 = vector.load %arg7[%c0_33, %c0_34] : memref<8x32xf32, #tpu.memory_space<vmem>>, vector<8x32xf32>
    tpu.vector_store %arg7[%c0_33, %c0_34], %62 {strides = array<i32>} : memref<8x32xf32, #tpu.memory_space<vmem>>, vector<8x32xf32>,
    return
  }
  func.func @transform_0(%arg0: i32) -> (i32, i32) {
    %c0_i32 = arith.constant 0 : i32
    %c0_i32_0 = arith.constant 0 : i32
    %c0_i32_1 = arith.constant 0 : i32
    return %c0_i32, %c0_i32_0 : i32, i32
  }
  func.func @transform_1(%arg0: i32) -> (i32, i32, i32) {
    %c0_i32 = arith.constant 0 : i32
    %c0_i32_0 = arith.constant 0 : i32
    %c0_i32_1 = arith.constant 0 : i32
    return %c0_i32, %arg0, %c0_i32_0 : i32, i32, i32
  }
  func.func @transform_2(%arg0: i32) -> (i32, i32, i32) {
    %c0_i32 = arith.constant 0 : i32
    %c0_i32_0 = arith.constant 0 : i32
    %c0_i32_1 = arith.constant 0 : i32
    %c0_i32_2 = arith.constant 0 : i32
    return %c0_i32, %c0_i32_0, %c0_i32_1 : i32, i32, i32
  }
  func.func @transform_3(%arg0: i32) -> (i32, i32) {
    %c0_i32 = arith.constant 0 : i32
    %c0_i32_0 = arith.constant 0 : i32
    return %arg0, %c0_i32 : i32, i32
  }
  func.func @transform_4(%arg0: i32) -> (i32, i32) {
    %c0_i32 = arith.constant 0 : i32
    %c0_i32_0 = arith.constant 0 : i32
    return %arg0, %c0_i32 : i32, i32
  }
  func.func @transform_5(%arg0: i32) -> (i32, i32) {
    %c0_i32 = arith.constant 0 : i32
    %c0_i32_0 = arith.constant 0 : i32
    return %arg0, %c0_i32 : i32, i32
  }
  func.func @transform_6(%arg0: i32) -> (i32, i32) {
    %c0_i32 = arith.constant 0 : i32
    %c0_i32_0 = arith.constant 0 : i32
    return %arg0, %c0_i32 : i32, i32
  }
}

</mosaic_0001>

<llo_original>
// kernel: conv1d_res_block.1
$region0: #{conv1d_res_block.1}
  #allocation0 [shape = 'u32[]', space=smem, size = 0x4, offset = 0x4, fixed_abs, tag = 'smem constant byte address 0x4 - core index']
  #allocation1 [shape = 'u32[144,128]{1,0:T(1,128)}', space=vmem, size = 0x12000, scoped, tag = 'internal scratch']
  %s0 = inlined_call_operand.vmem [shape: f32[8,32], index: 0, kind: input, shape index: {}]
  %s1 = inlined_call_operand.vmem [shape: bf16[3,8,8], index: 1, kind: input, shape index: {}]
  %s2 = inlined_call_operand.vmem [shape: f32[3,1,32], index: 2, kind: input, shape index: {}]
  %s3 = inlined_call_operand.vmem [shape: f32[8,1], index: 3, kind: input, shape index: {}]
  %s4 = inlined_call_operand.vmem [shape: f32[8,1], index: 4, kind: input, shape index: {}]
  %s5 = inlined_call_operand.vmem [shape: f32[8,1], index: 5, kind: input, shape index: {}]
  %s6 = inlined_call_operand.vmem [shape: f32[8,32], index: 6, kind: output, shape index: {}]
  %s7 = sld [smem:[#allocation0]]
  $region34: #{conv1d_res_block.1} parent=0
    _
  %s9 = ssub.s32 1, %s7
  %s10 = scalar_select 0, %s9, %s7
  // Predicated region
  $region2: #{conv1d_res_block.1} parent=0 // pred_check
    _
  $region3: #{conv1d_res_block.1} parent=0 // pred_check_branch
    %12 = sbr.rel (0) target = $region5
  $region4: #{conv1d_res_block.1} parent=0 // pred_region
    _
  $region5: #{conv1d_res_block.1} parent=0 // pred_fallthru
    _
  // Predicated region
  $region6: #{conv1d_res_block.1} parent=0 // pred_check
    _
  $region7: #{conv1d_res_block.1} parent=0 // pred_check_branch
    %14 = sbr.rel (0) target = $region9
  $region8: #{conv1d_res_block.1} parent=0 // pred_region
    _
  $region9: #{conv1d_res_block.1} parent=0 // pred_fallthru
    _
  // Predicated region
  $region10: #{conv1d_res_block.1} parent=0 // pred_check
    _
  $region11: #{conv1d_res_block.1} parent=0 // pred_check_branch
    %16 = sbr.rel (0) target = $region13
  $region12: #{conv1d_res_block.1} parent=0 // pred_region
    _
  $region13: #{conv1d_res_block.1} parent=0 // pred_fallthru
    _
  // Predicated region
  $region14: #{conv1d_res_block.1} parent=0 // pred_check
    _
  $region15: #{conv1d_res_block.1} parent=0 // pred_check_branch
    %18 = sbr.rel (0) target = $region17
  $region16: #{conv1d_res_block.1} parent=0 // pred_region
    _
  $region17: #{conv1d_res_block.1} parent=0 // pred_fallthru
    _
  // Predicated region
  $region18: #{conv1d_res_block.1} parent=0 // pred_check
    _
  $region19: #{conv1d_res_block.1} parent=0 // pred_check_branch
    %20 = sbr.rel (0) target = $region21
  $region20: #{conv1d_res_block.1} parent=0 // pred_region
    _
  $region21: #{conv1d_res_block.1} parent=0 // pred_fallthru
    _
  // Predicated region
  $region22: #{conv1d_res_block.1} parent=0 // pred_check
    _
  $region23: #{conv1d_res_block.1} parent=0 // pred_check_branch
    %22 = sbr.rel (0) target = $region25
  $region24: #{conv1d_res_block.1} parent=0 // pred_region
    _
  $region25: #{conv1d_res_block.1} parent=0 // pred_fallthru
    _
  %v24 = vld [vmem:[%s0] sm:$0xff]
  %vm25 = vcmask 1047808
  %26 = vrot.lane.b32.xlu0 %v24, 32
  %v27 = vpop.permute.xlu0 %26
  %v28 = vsel %vm25, %v27, %v24
  %29 = vrot.lane.b32.xlu0 %v28, 32
  %v30 = vpop.permute.xlu0 %29
  %v31 = vsel %vm25, %v30, %v24
  %v32 = vld [vmem:[%s2] sm:$0x1]
  %v34 = vlaneseq
  %v35 = vshrl.u32 %v34, 7
  %v36 = vsub.s32 0, %v35
  %v37 = vrot.slane %v32, %v36
  %38 = vrot.lane.b32.xlu0 %v37, 31
  %v39 = vpop.permute.xlu0 %38
  %v41 = vmul.f32 %v31, %v39
  %v42 = vld [vmem:[%s1] sm:$0xf]
  %v43 = vpack.c.bf16 %v41, %v41
  %s44 = scalar_lea.vmem %s1, 4
  %v45 = vld [vmem:[%s44] sm:$0xf]
  %v46 = vpack.c.bf16 %v24, %v24
  %vm47 = vcmask 64512
  %v49 = vsel %vm47, %v45, 0
  %vm51 = vcmask 1043456
  %v53 = vsel %vm51, %v46, 0
  %55 = vmatprep.subr.bf16.mxu0 0
  %56 = vmatpush1.bf16.msra.mxu0 0
  %57 = vmatprep.subr.bf16.mxu0 0
  %58 = vmatpush1.bf16.msra.mxu0 0
  %59 = vmatprep.subr.bf16.mxu0 0
  %60 = vmatpush1.bf16.msra.mxu0 0
  %61 = vmatprep.subr.bf16.mxu0 0
  %62 = vmatpush1.bf16.msra.mxu0 0
  %63 = vmatprep.subr.bf16.mxu0 0
  %64 = vmatpush1.bf16.msra.mxu0 0
  %65 = vmatprep.subr.bf16.mxu0 0
  %66 = vmatpush1.bf16.msra.mxu0 0
  %67 = vmatprep.subr.bf16.mxu0 0
  %68 = vmatpush1.bf16.msra.mxu0 0
  %69 = vmatprep.subr.bf16.mxu0 0
  %70 = vmatpush1.bf16.msra.mxu0 %v53
  %71 = vmatprep.subr.bf16.mxu0 0
  %72 = vmatpush2.bf16.msra.mxu0 0
  %73 = vmatprep.subr.bf16.mxu0 0
  %74 = vmatpush2.bf16.msra.mxu0 0
  %75 = vmatprep.subr.bf16.mxu0 0
  %76 = vmatpush2.bf16.msra.mxu0 0
  %77 = vmatprep.subr.bf16.mxu0 0
  %78 = vmatpush2.bf16.msra.mxu0 0
  %79 = vmatprep.subr.bf16.mxu0 0
  %80 = vmatpush2.bf16.msra.mxu0 0
  %81 = vmatprep.subr.bf16.mxu0 0
  %82 = vmatpush2.bf16.msra.mxu0 0
  %83 = vmatprep.subr.bf16.mxu0 0
  %84 = vmatpush2.bf16.msra.mxu0 0
  %85 = vmatprep.subr.bf16.mxu0 0
  %86 = vmatpush2.bf16.msra.mxu0 0
  %87 = vmatprep.mubr.bf16.mxu0 0
  %88 = vmatmul.mubr.bf16.gmra.mxu0 %v49
  %v89 = vpop.f32.mrf.mxu0
  %v90 = vadd.f32 0.0, %v89
  %v91 = vpop.f32.mrf.mxu0
  %v92 = vpop.f32.mrf.mxu0
  %v93 = vpop.f32.mrf.mxu0
  %94 = vdwg.mxu0
  %96 = vrot.lane.b32.xlu0 %v43, 97
  %v97 = vpop.permute.xlu0 %96
  %v99 = vsel %vm47, %v42, 0
  %v102 = vsel %vm51, %v97, 0
  %104 = vmatprep.subr.bf16.mxu0 0
  %105 = vmatpush1.bf16.msra.mxu0 0
  %106 = vmatprep.subr.bf16.mxu0 0
  %107 = vmatpush1.bf16.msra.mxu0 0
  %108 = vmatprep.subr.bf16.mxu0 0
  %109 = vmatpush1.bf16.msra.mxu0 0
  %110 = vmatprep.subr.bf16.mxu0 0
  %111 = vmatpush1.bf16.msra.mxu0 0
  %112 = vmatprep.subr.bf16.mxu0 0
  %113 = vmatpush1.bf16.msra.mxu0 0
  %114 = vmatprep.subr.bf16.mxu0 0
  %115 = vmatpush1.bf16.msra.mxu0 0
  %116 = vmatprep.subr.bf16.mxu0 0
  %117 = vmatpush1.bf16.msra.mxu0 0
  %118 = vmatprep.subr.bf16.mxu0 0
  %119 = vmatpush1.bf16.msra.mxu0 %v102
  %120 = vmatprep.subr.bf16.mxu0 0
  %121 = vmatpush2.bf16.msra.mxu0 0
  %122 = vmatprep.subr.bf16.mxu0 0
  %123 = vmatpush2.bf16.msra.mxu0 0
  %124 = vmatprep.subr.bf16.mxu0 0
  %125 = vmatpush2.bf16.msra.mxu0 0
  %126 = vmatprep.subr.bf16.mxu0 0
  %127 = vmatpush2.bf16.msra.mxu0 0
  %128 = vmatprep.subr.bf16.mxu0 0
  %129 = vmatpush2.bf16.msra.mxu0 0
  %130 = vmatprep.subr.bf16.mxu0 0
  %131 = vmatpush2.bf16.msra.mxu0 0
  %132 = vmatprep.subr.bf16.mxu0 0
  %133 = vmatpush2.bf16.msra.mxu0 0
  %134 = vmatprep.subr.bf16.mxu0 0
  %135 = vmatpush2.bf16.msra.mxu0 0
  %136 = vmatprep.mubr.bf16.mxu0 0
  %137 = vmatmul.mubr.bf16.gmra.mxu0 %v99
  %v138 = vpop.f32.mrf.mxu0
  %v139 = vadd.f32 %v90, %v138
  %v140 = vpop.f32.mrf.mxu0
  %v141 = vpop.f32.mrf.mxu0
  %v142 = vpop.f32.mrf.mxu0
  %143 = vdwg.mxu0
  %s144 = scalar_lea.vmem %s2, 2
  %v145 = vld [vmem:[%s144] sm:$0x1]
  %v147 = vlaneseq
  %v148 = vshrl.u32 %v147, 7
  %v149 = vsub.s32 0, %v148
  %v150 = vrot.slane %v145, %v149
  %151 = vrot.lane.b32.xlu0 %v150, 1
  %v152 = vpop.permute.xlu0 %151
  %v154 = vmul.f32 %v31, %v152
  %s155 = scalar_lea.vmem %s1, 8
  %v156 = vld [vmem:[%s155] sm:$0xf]
  %v157 = vpack.c.bf16 %v154, %v154
  %159 = vrot.lane.b32.xlu0 %v157, 127
  %v160 = vpop.permute.xlu0 %159
  %v162 = vsel %vm47, %v156, 0
  %v165 = vsel %vm51, %v160, 0
  %167 = vmatprep.subr.bf16.mxu0 0
  %168 = vmatpush1.bf16.msra.mxu0 0
  %169 = vmatprep.subr.bf16.mxu0 0
  %170 = vmatpush1.bf16.msra.mxu0 0
  %171 = vmatprep.subr.bf16.mxu0 0
  %172 = vmatpush1.bf16.msra.mxu0 0
  %173 = vmatprep.subr.bf16.mxu0 0
  %174 = vmatpush1.bf16.msra.mxu0 0
  %175 = vmatprep.subr.bf16.mxu0 0
  %176 = vmatpush1.bf16.msra.mxu0 0
  %177 = vmatprep.subr.bf16.mxu0 0
  %178 = vmatpush1.bf16.msra.mxu0 0
  %179 = vmatprep.subr.bf16.mxu0 0
  %180 = vmatpush1.bf16.msra.mxu0 0
  %181 = vmatprep.subr.bf16.mxu0 0
  %182 = vmatpush1.bf16.msra.mxu0 %v165
  %183 = vmatprep.subr.bf16.mxu0 0
  %184 = vmatpush2.bf16.msra.mxu0 0
  %185 = vmatprep.subr.bf16.mxu0 0
  %186 = vmatpush2.bf16.msra.mxu0 0
  %187 = vmatprep.subr.bf16.mxu0 0
  %188 = vmatpush2.bf16.msra.mxu0 0
  %189 = vmatprep.subr.bf16.mxu0 0
  %190 = vmatpush2.bf16.msra.mxu0 0
  %191 = vmatprep.subr.bf16.mxu0 0
  %192 = vmatpush2.bf16.msra.mxu0 0
  %193 = vmatprep.subr.bf16.mxu0 0
  %194 = vmatpush2.bf16.msra.mxu0 0
  %195 = vmatprep.subr.bf16.mxu0 0
  %196 = vmatpush2.bf16.msra.mxu0 0
  %197 = vmatprep.subr.bf16.mxu0 0
  %198 = vmatpush2.bf16.msra.mxu0 0
  %199 = vmatprep.mubr.bf16.mxu0 0
  %200 = vmatmul.mubr.bf16.gmra.mxu0 %v162
  %v201 = vpop.f32.mrf.mxu0
  %v202 = vadd.f32 0.0, %v201
  %v203 = vpop.f32.mrf.mxu0
  %v204 = vpop.f32.mrf.mxu0
  %v205 = vpop.f32.mrf.mxu0
  %206 = vdwg.mxu0
  %v207 = vadd.f32 %v139, %v202
  %vm208 = vcmask 261120
  %v209 = vsel %vm208, %v207, 0.0
  %210 = vadd.xlane.f32.xlu0 %v209
  %v211 = vpop.xlane.xlu0 %210
  %v212 = vrcp.pop 32.0
  %v213 = vmul.f32 %v211, %v212
  %v214 = vmul.f32 %v207, %v207
  %v215 = vsel %vm208, %v214, 0.0
  %216 = vadd.xlane.f32.xlu0 %v215
  %v217 = vpop.xlane.xlu0 %216
  %v218 = vmul.f32 %v217, %v212
  %v219 = vmul.f32 %v213, %v213
  %v220 = vsub.f32 %v218, %v219
  %v221 = vmax.f32 %v220, 0.0
  %v222 = vld [vmem:[%s3] sm:$0xff]
  %v223 = vadd.f32 %v213, %v222
  %v224 = vld [vmem:[%s4] sm:$0xff]
  %v225 = vadd.f32 %v221, 1e-05
  %v226 = vrsqrt.pop %v225
  %v227 = vmul.f32 %v224, %v226
  %v228 = vld [vmem:[%s5] sm:$0xff]
  %v229 = vsub.f32 %v222, %v223
  %v230 = vmul.f32 %v229, %v227
  %v231 = vadd.f32 %v228, %v230
  %233 = vset.pattern.permute.xlu0 0
  %234 = vperm.xlu0 %233, %v227
  %v235 = vpop.permute.xlu0 %234
  %v237 = vmul.f32 %v207, %v235
  %239 = vset.pattern.permute.xlu0 0
  %240 = vperm.xlu0 %239, %v231
  %v241 = vpop.permute.xlu0 %240
  %v243 = vadd.f32 %v237, %v241
  %v244 = vmax.f32 %v243, 0.0
  %s245 = smul.u32 0, 8
  %s246 = scalar_lea.vmem %s0, %s245
  %v247 = vld [vmem:[%s246] sm:$0xff]
  %v248 = vadd.f32 %v247, %v244
  %249 = vst.msk [vmem:[%s6] sm:$0xff] %vm208, %v248
  // Predicated region
  $region26: #{conv1d_res_block.1} parent=0 // pred_check
    _
  $region27: #{conv1d_res_block.1} parent=0 // pred_check_branch
    %251 = sbr.rel (0) target = $region29
  $region28: #{conv1d_res_block.1} parent=0 // pred_region
    _
  $region29: #{conv1d_res_block.1} parent=0 // pred_fallthru
    _
  // Predicated region
  $region30: #{conv1d_res_block.1} parent=0 // pred_check
    _
  $region31: #{conv1d_res_block.1} parent=0 // pred_check_branch
    %253 = sbr.rel (0) target = $region33
  $region32: #{conv1d_res_block.1} parent=0 // pred_region
    _
  $region33: #{conv1d_res_block.1} parent=0 // pred_fallthru
    _

</llo_original>
